<compile_context>
chip_gen: v7x
topology: tpu7x:2x2x1
jax: 0.10.0
libtpu: 0.0.40
codegen_flags: <defaults>
</compile_context>

<pallas_src>
import functools

import jax
import jax.numpy as jnp
from jax.experimental import pallas as pl
from jax.experimental.pallas import tpu as pltpu


# ---------------------------------------------------------------------------
# Fused kernel: dilated Conv1d (no padding, stride=1, bias folded away)
#               + BatchNorm1d (training-mode batch statistics)
#               + PReLU (single shared alpha)
# One C_out tile per grid step; whole batch resident.
# ---------------------------------------------------------------------------
def _tcn_block_kernel(x_ref, w_ref, gamma_ref, beta_ref, alpha_ref, o_ref, *,
                      dilation, k_taps, c_in, t_out, eps):
    # x_ref:     (B, C_in, T_in)   f32
    # w_ref:     (Ct, K*C_in)      f32   flattened conv weights (row = k*C_in+c)
    # gamma_ref: (Ct, 1)           f32   BN weight
    # beta_ref:  (Ct, 1)           f32   BN bias
    # alpha_ref: (1,)              f32   PReLU alpha (SMEM scalar)
    # o_ref:     (B, Ct, T_out)    f32
    x = x_ref[...]
    w = w_ref[...]
    batch = x.shape[0]
    ct = w.shape[0]

    if c_in % 8 == 0:
        # im2col: stack the K dilated slices along the sublane (channel) axis.
        # Offsets are multiples of C_in (tile-aligned since C_in % 8 == 0), so
        # the concat is cheap; the whole batch then goes through one batched
        # MXU contraction of size K*C_in.
        xs = jnp.concatenate(
            [x[:, :, k * dilation: k * dilation + t_out]
             for k in range(k_taps)], axis=1)               # (B, K*C_in, T_out)
        wb = jnp.broadcast_to(
            w.astype(jnp.bfloat16)[None], (batch, ct, k_taps * c_in))
        y = jnp.einsum('bok,bkt->bot', wb, xs.astype(jnp.bfloat16),
                       preferred_element_type=jnp.float32)  # (B, Ct, T_out)
    else:
        # Tiny C_in (first block, C_in=1): the MXU cannot be filled, so the
        # conv is K*C_in broadcast multiply-adds on the VPU, exact f32.
        y = jnp.zeros((batch, ct, t_out), jnp.float32)
        for k in range(k_taps):
            xk = x[:, :, k * dilation: k * dilation + t_out]   # (B, C_in, T_out)
            wk = w[:, k * c_in:(k + 1) * c_in]                 # (Ct, C_in)
            for c in range(c_in):
                y = y + wk[:, c:c + 1][None, :, :] * xk[:, c:c + 1, :]

    # NOTE: the conv bias is intentionally not added — training-mode BatchNorm
    # subtracts the per-channel batch mean, so a per-channel constant shift
    # cancels exactly.
    n = float(batch * t_out)
    s = jnp.sum(y, axis=(0, 2), keepdims=True)               # (1, Ct, 1)
    ss = jnp.sum(y * y, axis=(0, 2), keepdims=True)
    mean = s * (1.0 / n)
    var = jnp.maximum(ss * (1.0 / n) - mean * mean, 0.0)     # biased (PyTorch)
    inv = jax.lax.rsqrt(var + eps)

    gamma = gamma_ref[...][None]                             # (1, Ct, 1)
    beta = beta_ref[...][None]
    alpha = alpha_ref[0]
    z = gamma * ((y - mean) * inv) + beta
    o_ref[...] = jnp.where(z >= 0.0, z, alpha * z)           # single full-tile store


def tcn_block(x, w, gamma, beta, alpha, *, dilation, eps=1e-5):
    """One fused EncoderTCNBlock.

    x: (B, C_in, T_in) f32, w: (C_out, C_in, K) PyTorch layout,
    gamma/beta: (C_out, 1), alpha: (1,). Returns (B, C_out, T_out) f32.
    """
    B, C_in, T_in = x.shape
    C_out, _, K = w.shape
    t_out = T_in - (K - 1) * dilation
    assert t_out >= 1

    # (C_out, C_in, K) -> (C_out, K*C_in) with flat row index k*C_in + c.
    # Kept f32: the MXU path casts to bf16 in-kernel, the VPU path stays exact.
    w_flat = jnp.transpose(w, (0, 2, 1)).reshape(C_out, K * C_in)

    # Channel-out tiling: per-channel BN stats are independent, so this axis is
    # embarrassingly parallel (megacore on v7x, VMEM headroom at scale).
    # At toy channel counts this is a single grid step.
    ct = C_out if C_out <= 256 else 256
    grid = (pl.cdiv(C_out, ct),)

    kern = functools.partial(
        _tcn_block_kernel, dilation=dilation, k_taps=K, c_in=C_in,
        t_out=t_out, eps=eps)

    return pl.pallas_call(
        kern,
        out_shape=jax.ShapeDtypeStruct((B, C_out, t_out), jnp.float32),
        grid=grid,
        in_specs=[
            pl.BlockSpec((B, C_in, T_in), lambda i: (0, 0, 0)),
            pl.BlockSpec((ct, K * C_in), lambda i: (i, 0)),
            pl.BlockSpec((ct, 1), lambda i: (i, 0)),
            pl.BlockSpec((ct, 1), lambda i: (i, 0)),
            pl.BlockSpec(memory_space=pltpu.MemorySpace.SMEM),
        ],
        out_specs=pl.BlockSpec((B, ct, t_out), lambda i: (0, i, 0)),
        compiler_params=pltpu.CompilerParams(
            dimension_semantics=("parallel",)),
    )(x, w_flat, gamma, beta, alpha)


# ---------------------------------------------------------------------------
# Parameter init (deterministic, shapes mirror the PyTorch __init__)
# ---------------------------------------------------------------------------
def init_encoder_params(key, *, n_inputs, n_blocks, kernel_size, n_channels,
                        dilation_growth):
    blocks = []
    in_ch = n_inputs
    for n in range(n_blocks):
        out_ch = n_channels if n == 0 else in_ch * 2
        dilation = dilation_growth ** (n + 1)
        key, kv, kg, kb = jax.random.split(key, 4)
        # weight_norm(Conv1d): effective weight = g * v / ||v|| (norm over dims 1,2)
        v = jax.random.normal(kv, (out_ch, in_ch, kernel_size), jnp.float32) * 0.1
        g = jax.random.uniform(kg, (out_ch, 1, 1), jnp.float32, 0.5, 1.5)
        w = g * v / jnp.sqrt(jnp.sum(v * v, axis=(1, 2), keepdims=True))
        b = jax.random.normal(kb, (out_ch,), jnp.float32) * 0.1
        blocks.append(dict(
            w=w,
            b=b,  # conv bias exists in the module but is exactly cancelled by
                  # the batch-stats BatchNorm that follows -> not used in-kernel
            dilation=dilation,
            gamma=jnp.ones((out_ch, 1), jnp.float32),   # BatchNorm1d weight
            beta=jnp.zeros((out_ch, 1), jnp.float32),   # BatchNorm1d bias
            alpha=jnp.full((1,), 0.25, jnp.float32),    # PReLU init
        ))
        in_ch = out_ch
    # TODO(synk): conv_mean / conv_scale / dense_latent / conv_latent exist in
    # the PyTorch __init__ but are unused in forward when use_kl=False and
    # use_latent=False, so they are not implemented here.
    return blocks


# ---------------------------------------------------------------------------
# Forward: returns encoder_outputs = [x, block1(x), block2(...), ...]
# ---------------------------------------------------------------------------
def encoder_tcn_forward(x, blocks):
    outputs = [x]
    for blk in blocks:
        x = tcn_block(x, blk["w"], blk["gamma"], blk["beta"], blk["alpha"],
                      dilation=blk["dilation"])
        outputs.append(x)
    return outputs


if __name__ == "__main__":
    # Small config consistent with the module constructor.
    n_inputs, n_blocks, kernel_size = 1, 3, 3
    n_channels, dilation_growth = 8, 2

    key = jax.random.PRNGKey(0)
    key, kx = jax.random.split(key)
    # x layout: (B, C, T) — matches PyTorch Conv1d input.
    x = jax.random.normal(kx, (2, n_inputs, 64), jnp.float32)

    blocks = init_encoder_params(
        key, n_inputs=n_inputs, n_blocks=n_blocks, kernel_size=kernel_size,
        n_channels=n_channels, dilation_growth=dilation_growth)

    outs = encoder_tcn_forward(x, blocks)
    for o in outs:
        jax.block_until_ready(o)

    # Expected shapes: (2,1,64) -> (2,8,60) -> (2,16,52) -> (2,32,36)
    assert outs[0].shape == (2, 1, 64)
    assert outs[1].shape == (2, 8, 60)
    assert outs[2].shape == (2, 16, 52)
    assert outs[3].shape == (2, 32, 36)
    for o in outs:
        assert bool(jnp.all(jnp.isfinite(o)))
    print("KERNEL_OK")
</pallas_src>

<mosaic_0001>
module attributes {stable_mosaic.version = 11 : i64} {
  func.func @_tcn_block_kernel(%arg0: i32, %arg1: memref<2x1x64xf32, #tpu.memory_space<vmem>>, %arg2: memref<8x3xf32, #tpu.memory_space<vmem>>, %arg3: memref<8x1xf32, #tpu.memory_space<vmem>>, %arg4: memref<8x1xf32, #tpu.memory_space<vmem>>, %arg5: memref<1xf32, #tpu.memory_space<smem>>, %arg6: memref<2x8x60xf32, #tpu.memory_space<vmem>>) attributes {dimension_semantics = [#tpu.dimension_semantics<parallel>], iteration_bounds = array<i64: 1>, scalar_prefetch = 0 : i64, scratch_operands = 0 : i64, tpu.core_type = #tpu.core_type<tc>, window_params = [{pipeline_mode = #tpu.pipeline_mode<synchronous>, transform_indices = @transform_0, window_bounds = array<i64: 2, 1, 64>}, {transform_indices = @transform_1, window_bounds = array<i64: 8, 3>}, {transform_indices = @transform_2, window_bounds = array<i64: 8, 1>}, {transform_indices = @transform_3, window_bounds = array<i64: 8, 1>}, {transform_indices = @transform_4, window_bounds = array<i64: 1>}, {transform_indices = @transform_5, window_bounds = array<i64: 2, 8, 60>}]} {
    %c0 = arith.constant 0 : index
    %c0_0 = arith.constant 0 : index
    %c0_1 = arith.constant 0 : index
    %0 = vector.load %arg1[%c0, %c0_0, %c0_1] : memref<2x1x64xf32, #tpu.memory_space<vmem>>, vector<2x1x64xf32>
    %c0_2 = arith.constant 0 : index
    %c0_3 = arith.constant 0 : index
    %1 = vector.load %arg2[%c0_2, %c0_3] : memref<8x3xf32, #tpu.memory_space<vmem>>, vector<8x3xf32>
    %cst = arith.constant 0.000000e+00 : f32
    %2 = vector.broadcast %cst : f32 to vector<2x8x60xf32>
    %3 = vector.extract_strided_slice %0 {offsets = [0, 0, 0], sizes = [2, 1, 60], strides = [1, 1, 1]} : vector<2x1x64xf32> to vector<2x1x60xf32>
    %4 = vector.extract_strided_slice %1 {offsets = [0, 0], sizes = [8, 1], strides = [1, 1]} : vector<8x3xf32> to vector<8x1xf32>
    %5 = vector.shape_cast %4 : vector<8x1xf32> to vector<1x8x1xf32>
    %6 = vector.broadcast %5 : vector<1x8x1xf32> to vector<2x8x60xf32>
    %7 = vector.broadcast %3 : vector<2x1x60xf32> to vector<2x8x60xf32>
    %8 = arith.mulf %6, %7 : vector<2x8x60xf32>
    %9 = arith.addf %2, %8 : vector<2x8x60xf32>
    %10 = vector.extract_strided_slice %0 {offsets = [0, 0, 2], sizes = [2, 1, 60], strides = [1, 1, 1]} : vector<2x1x64xf32> to vector<2x1x60xf32>
    %11 = vector.extract_strided_slice %1 {offsets = [0, 1], sizes = [8, 1], strides = [1, 1]} : vector<8x3xf32> to vector<8x1xf32>
    %12 = vector.shape_cast %11 : vector<8x1xf32> to vector<1x8x1xf32>
    %13 = vector.broadcast %12 : vector<1x8x1xf32> to vector<2x8x60xf32>
    %14 = vector.broadcast %10 : vector<2x1x60xf32> to vector<2x8x60xf32>
    %15 = arith.mulf %13, %14 : vector<2x8x60xf32>
    %16 = arith.addf %9, %15 : vector<2x8x60xf32>
    %17 = vector.extract_strided_slice %0 {offsets = [0, 0, 4], sizes = [2, 1, 60], strides = [1, 1, 1]} : vector<2x1x64xf32> to vector<2x1x60xf32>
    %18 = vector.extract_strided_slice %1 {offsets = [0, 2], sizes = [8, 1], strides = [1, 1]} : vector<8x3xf32> to vector<8x1xf32>
    %19 = vector.shape_cast %18 : vector<8x1xf32> to vector<1x8x1xf32>
    %20 = vector.broadcast %19 : vector<1x8x1xf32> to vector<2x8x60xf32>
    %21 = vector.broadcast %17 : vector<2x1x60xf32> to vector<2x8x60xf32>
    %22 = arith.mulf %20, %21 : vector<2x8x60xf32>
    %23 = arith.addf %16, %22 : vector<2x8x60xf32>
    %cst_4 = arith.constant dense<0.000000e+00> : vector<8xf32>
    %24 = vector.multi_reduction <add>, %23, %cst_4 [0, 2] : vector<2x8x60xf32> to vector<8xf32>
    %25 = vector.shape_cast %24 : vector<8xf32> to vector<1x8x1xf32>
    %26 = arith.mulf %23, %23 : vector<2x8x60xf32>
    %cst_5 = arith.constant dense<0.000000e+00> : vector<8xf32>
    %27 = vector.multi_reduction <add>, %26, %cst_5 [0, 2] : vector<2x8x60xf32> to vector<8xf32>
    %28 = vector.shape_cast %27 : vector<8xf32> to vector<1x8x1xf32>
    %cst_6 = arith.constant 0.00833333377 : f32
    %29 = vector.broadcast %cst_6 : f32 to vector<1x8x1xf32>
    %30 = arith.mulf %25, %29 : vector<1x8x1xf32>
    %cst_7 = arith.constant 0.00833333377 : f32
    %31 = vector.broadcast %cst_7 : f32 to vector<1x8x1xf32>
    %32 = arith.mulf %28, %31 : vector<1x8x1xf32>
    %33 = arith.mulf %30, %30 : vector<1x8x1xf32>
    %34 = arith.subf %32, %33 : vector<1x8x1xf32>
    %cst_8 = arith.constant 0.000000e+00 : f32
    %35 = vector.broadcast %cst_8 : f32 to vector<1x8x1xf32>
    %36 = arith.maximumf %34, %35 : vector<1x8x1xf32>
    %cst_9 = arith.constant 9.99999974E-6 : f32
    %37 = vector.broadcast %cst_9 : f32 to vector<1x8x1xf32>
    %38 = arith.addf %36, %37 : vector<1x8x1xf32>
    %39 = math.rsqrt %38 : vector<1x8x1xf32>
    %c0_10 = arith.constant 0 : index
    %c0_11 = arith.constant 0 : index
    %40 = vector.load %arg3[%c0_10, %c0_11] : memref<8x1xf32, #tpu.memory_space<vmem>>, vector<8x1xf32>
    %41 = vector.shape_cast %40 : vector<8x1xf32> to vector<1x8x1xf32>
    %c0_12 = arith.constant 0 : index
    %c0_13 = arith.constant 0 : index
    %42 = vector.load %arg4[%c0_12, %c0_13] : memref<8x1xf32, #tpu.memory_space<vmem>>, vector<8x1xf32>
    %43 = vector.shape_cast %42 : vector<8x1xf32> to vector<1x8x1xf32>
    %c0_14 = arith.constant 0 : index
    %44 = memref.load %arg5[%c0_14] : memref<1xf32, #tpu.memory_space<smem>>
    %45 = vector.broadcast %30 : vector<1x8x1xf32> to vector<2x8x60xf32>
    %46 = arith.subf %23, %45 : vector<2x8x60xf32>
    %47 = vector.broadcast %39 : vector<1x8x1xf32> to vector<2x8x60xf32>
    %48 = arith.mulf %46, %47 : vector<2x8x60xf32>
    %49 = vector.broadcast %41 : vector<1x8x1xf32> to vector<2x8x60xf32>
    %50 = arith.mulf %49, %48 : vector<2x8x60xf32>
    %51 = vector.broadcast %43 : vector<1x8x1xf32> to vector<2x8x60xf32>
    %52 = arith.addf %50, %51 : vector<2x8x60xf32>
    %cst_15 = arith.constant 0.000000e+00 : f32
    %53 = vector.broadcast %cst_15 : f32 to vector<2x8x60xf32>
    %54 = arith.cmpf oge, %52, %53 : vector<2x8x60xf32>
    %55 = vector.broadcast %44 : f32 to vector<2x8x60xf32>
    %56 = arith.mulf %55, %52 : vector<2x8x60xf32>
    %57 = arith.select %54, %52, %56 : vector<2x8x60xi1>, vector<2x8x60xf32>
    %c0_16 = arith.constant 0 : index
    %c0_17 = arith.constant 0 : index
    %c0_18 = arith.constant 0 : index
    %58 = vector.load %arg6[%c0_16, %c0_17, %c0_18] : memref<2x8x60xf32, #tpu.memory_space<vmem>>, vector<2x8x60xf32>
    tpu.vector_store %arg6[%c0_16, %c0_17, %c0_18], %57 {strides = array<i32>} : memref<2x8x60xf32, #tpu.memory_space<vmem>>, vector<2x8x60xf32>,
    return
  }
  func.func @transform_0(%arg0: i32) -> (i32, i32, i32) {
    %c0_i32 = arith.constant 0 : i32
    %c0_i32_0 = arith.constant 0 : i32
    %c0_i32_1 = arith.constant 0 : i32
    %c0_i32_2 = arith.constant 0 : i32
    return %c0_i32, %c0_i32_0, %c0_i32_1 : i32, i32, i32
  }
  func.func @transform_1(%arg0: i32) -> (i32, i32) {
    %c0_i32 = arith.constant 0 : i32
    %c0_i32_0 = arith.constant 0 : i32
    return %arg0, %c0_i32 : i32, i32
  }
  func.func @transform_2(%arg0: i32) -> (i32, i32) {
    %c0_i32 = arith.constant 0 : i32
    %c0_i32_0 = arith.constant 0 : i32
    return %arg0, %c0_i32 : i32, i32
  }
  func.func @transform_3(%arg0: i32) -> (i32, i32) {
    %c0_i32 = arith.constant 0 : i32
    %c0_i32_0 = arith.constant 0 : i32
    return %arg0, %c0_i32 : i32, i32
  }
  func.func @transform_4(%arg0: i32) -> i32 {
    %c0_i32 = arith.constant 0 : i32
    %c0_i32_0 = arith.constant 0 : i32
    return %c0_i32 : i32
  }
  func.func @transform_5(%arg0: i32) -> (i32, i32, i32) {
    %c0_i32 = arith.constant 0 : i32
    %c0_i32_0 = arith.constant 0 : i32
    %c0_i32_1 = arith.constant 0 : i32
    return %c0_i32, %arg0, %c0_i32_0 : i32, i32, i32
  }
}

</mosaic_0001>

<llo_original>
// kernel: tpu_custom_call.1
$region0: #{tpu_custom_call.1}
  #allocation0 [shape = 'u32[]', space=smem, size = 0x4, offset = 0x4, fixed_abs, tag = 'smem constant byte address 0x4 - core index']
  #allocation1 [shape = 'u32[144,128]{1,0:T(1,128)}', space=vmem, size = 0x12000, scoped, tag = 'internal scratch']
  #allocation2 [shape = 'f32[1]{0:T(128)S(6)}', space=smem, size = 0x200, scoped, tag = 'scoped memory for tpu_custom_call.1']
  %s0 = inlined_call_operand.vmem [shape: f32[2,1,64], index: 0, kind: input, shape index: {}]
  %s1 = inlined_call_operand.vmem [shape: f32[8,3], index: 1, kind: input, shape index: {}]
  %s2 = inlined_call_operand.vmem [shape: f32[8,1], index: 2, kind: input, shape index: {}]
  %s3 = inlined_call_operand.vmem [shape: f32[8,1], index: 3, kind: input, shape index: {}]
  %s4 = inlined_call_operand.<no memory space> [shape: f32[1], index: 4, kind: input, shape index: {}]
  %s5 = inlined_call_operand.hbm [shape: f32[2,8,60], index: 5, kind: output, shape index: {}]
  %s6 = sld [smem:[#allocation0]]
  $region30: #{tpu_custom_call.1} parent=0
    _
  %s8 = ssub.s32 1, %s6
  %s9 = scalar_select 0, %s8, %s6
  %10 = sst [smem:[#allocation2]] %s4
  $region1: #{tpu_custom_call.1} parent=0
    #allocation3 [shape = 'u8[8192]{0}', space=vmem, size = 0x2000, scoped, tag = 'output window, operand 0, single buffered']
    #allocation4 [shape = 's32[1]{0}', space=sflag, size = 0x4, scoped, tag = 'scoped memory for tpu_custom_call.1']
    %11 = vsyncpa [#allocation4], 0
    // Predicated region
    $region2: #{tpu_custom_call.1} parent=1 // pred_check
      _
    $region3: #{tpu_custom_call.1} parent=1 // pred_check_branch
      %13 = sbr.rel (0) target = $region5
    $region4: #{tpu_custom_call.1} parent=1 // pred_region
      _
    $region5: #{tpu_custom_call.1} parent=1 // pred_fallthru
      _
    // Predicated region
    $region6: #{tpu_custom_call.1} parent=1 // pred_check
      _
    $region7: #{tpu_custom_call.1} parent=1 // pred_check_branch
      %15 = sbr.rel (0) target = $region9
    $region8: #{tpu_custom_call.1} parent=1 // pred_region
      _
    $region9: #{tpu_custom_call.1} parent=1 // pred_fallthru
      _
    // Predicated region
    $region10: #{tpu_custom_call.1} parent=1 // pred_check
      _
    $region11: #{tpu_custom_call.1} parent=1 // pred_check_branch
      %17 = sbr.rel (0) target = $region13
    $region12: #{tpu_custom_call.1} parent=1 // pred_region
      _
    $region13: #{tpu_custom_call.1} parent=1 // pred_fallthru
      _
    // Predicated region
    $region14: #{tpu_custom_call.1} parent=1 // pred_check
      _
    $region15: #{tpu_custom_call.1} parent=1 // pred_check_branch
      %19 = sbr.rel (0) target = $region17
    $region16: #{tpu_custom_call.1} parent=1 // pred_region
      _
    $region17: #{tpu_custom_call.1} parent=1 // pred_fallthru
      _
    // Predicated region
    $region18: #{tpu_custom_call.1} parent=1 // pred_check
      _
    $region19: #{tpu_custom_call.1} parent=1 // pred_check_branch
      %21 = sbr.rel (0) target = $region21
    $region20: #{tpu_custom_call.1} parent=1 // pred_region
      _
    $region21: #{tpu_custom_call.1} parent=1 // pred_fallthru
      _
    %v22 = vld [vmem:[%s0] sm:$0x1]
    %v23 = vld [vmem:[%s0 + $0x1] sm:$0x1]
    %v24 = vld [vmem:[%s1] sm:$0xff]
    %26 = vset.pattern.permute.xlu0 0
    %27 = vperm.xlu0 %26, %v24
    %v28 = vpop.permute.xlu0 %27
    %v32 = vlaneseq
    %v33 = vshrl.u32 %v32, 7
    %v34 = vsub.s32 0, %v33
    %v35 = vrot.slane %v22, %v34
    %v36 = vlaneseq
    %v37 = vshrl.u32 %v36, 7
    %v38 = vsub.s32 0, %v37
    %v39 = vrot.slane %v23, %v38
    %v42 = vmul.f32 %v28, %v35
    %v43 = vmul.f32 %v28, %v39
    %v44 = vadd.f32 %v42, 0.0
    %v45 = vadd.f32 %v43, 0.0
    %46 = vset.pattern.permute.xlu0 1
    %47 = vperm.xlu0 %46, %v24
    %v48 = vpop.permute.xlu0 %47
    %v50 = vmul.f32 %v48, %v35
    %v51 = vmul.f32 %v48, %v39
    %54 = vrot.lane.b32.xlu0 %v50, 126
    %v55 = vpop.permute.xlu0 %54
    %56 = vrot.lane.b32.xlu0 %v51, 126
    %v57 = vpop.permute.xlu0 %56
    %v60 = vadd.f32 %v44, %v55
    %v61 = vadd.f32 %v45, %v57
    %62 = vset.pattern.permute.xlu0 2
    %63 = vperm.xlu0 %62, %v24
    %v64 = vpop.permute.xlu0 %63
    %v66 = vmul.f32 %v64, %v35
    %v67 = vmul.f32 %v64, %v39
    %70 = vrot.lane.b32.xlu0 %v66, 124
    %v71 = vpop.permute.xlu0 %70
    %72 = vrot.lane.b32.xlu0 %v67, 124
    %v73 = vpop.permute.xlu0 %72
    %v76 = vadd.f32 %v60, %v71
    %v77 = vadd.f32 %v61, %v73
    %vm78 = vcmask 490496
    %v79 = vsel %vm78, %v76, 0.0
    %v80 = vsel %vm78, %v77, 0.0
    %v81 = vadd.f32 %v79, %v80
    %82 = vadd.xlane.f32.xlu0 %v81
    %v83 = vpop.xlane.xlu0 %82
    %v84 = vmul.f32 %v76, %v76
    %v85 = vmul.f32 %v77, %v77
    %v86 = vsel %vm78, %v84, 0.0
    %v87 = vsel %vm78, %v85, 0.0
    %v88 = vadd.f32 %v86, %v87
    %89 = vadd.xlane.f32.xlu0 %v88
    %v90 = vpop.xlane.xlu0 %89
    %v91 = vmul.f32 %v83, 0.008333334
    %v92 = vmul.f32 %v90, 0.008333334
    %v93 = vmul.f32 %v91, %v91
    %v94 = vsub.f32 %v92, %v93
    %v95 = vmax.f32 %v94, 0.0
    %v96 = vadd.f32 %v95, 1e-05
    %v97 = vrsqrt.pop %v96
    %v98 = vld [vmem:[%s2] sm:$0xff]
    %v99 = vld [vmem:[%s3] sm:$0xff]
    %s100 = sld [smem:[#allocation2]]
    %v101 = vsub.f32 %v76, %v91
    %v102 = vsub.f32 %v77, %v91
    %v103 = vmul.f32 %v101, %v97
    %v104 = vmul.f32 %v102, %v97
    %106 = vset.pattern.permute.xlu0 0
    %107 = vperm.xlu0 %106, %v98
    %v108 = vpop.permute.xlu0 %107
    %v110 = vmul.f32 %v108, %v103
    %v111 = vmul.f32 %v108, %v104
    %113 = vset.pattern.permute.xlu0 0
    %114 = vperm.xlu0 %113, %v99
    %v115 = vpop.permute.xlu0 %114
    %v117 = vadd.f32 %v110, %v115
    %v118 = vadd.f32 %v111, %v115
    %vm119 = vcmp.ge.f32.partialorder %v117, 0.0
    %vm120 = vcmp.ge.f32.partialorder %v118, 0.0
    %v121 = vstv %s100
    %v122 = vmul.f32 %v121, %v117
    %v123 = vmul.f32 %v121, %v118
    %v124 = vsel %vm119, %v117, %v122
    %v125 = vsel %vm120, %v118, %v123
    %126 = vst.msk [vmem:[#allocation3] sm:$0xff] %vm78, %v124
    %127 = vst.msk [vmem:[#allocation3 + $0x8] sm:$0xff] %vm78, %v125
    // Predicated region
    $region22: #{tpu_custom_call.1} parent=1 // pred_check
      _
    $region23: #{tpu_custom_call.1} parent=1 // pred_check_branch
      %129 = sbr.rel (0) target = $region25
    $region24: #{tpu_custom_call.1} parent=1 // pred_region
      %s131 = ssub.s32 256, 256
      %132 = vsyncadd [#allocation4], %s131
      %s133 = sshll.u32 [#allocation3], 4
      %s134 = int_to_ptr.vmem [resolvable:$true] %s133
      %139 = dma.vmem_to_hbm [thread:$0]  %s134, 256, %s5, [#allocation4], 128, 128, 8
    $region25: #{tpu_custom_call.1} parent=1 // pred_fallthru
      _
    // Predicated region
    $region26: #{tpu_custom_call.1} parent=1 // pred_check
      _
    $region27: #{tpu_custom_call.1} parent=1 // pred_check_branch
      %141 = sbr.rel (0) target = $region29
    $region28: #{tpu_custom_call.1} parent=1 // pred_region
      %142 = dma.done [#allocation4], 256
    $region29: #{tpu_custom_call.1} parent=1 // pred_fallthru
      _
    %143 = vsyncpa [#allocation4], 1

</llo_original>
